<compile_context>
chip_gen: v6e
topology: v6e:2x2x1
jax: 0.10.0
libtpu: 0.0.40
codegen_flags: <defaults>
</compile_context>

<pallas_src>
import functools

import jax
import jax.numpy as jnp
from jax.experimental import pallas as pl
from jax.experimental.pallas import tpu as pltpu

_LANE = 128       # vreg lane width
_SUBLANE = 8      # vreg sublane count (f32)
_NEG_SLOPE = 0.1  # matches the original nn.LeakyReLU(0.1) (NOT torch's 0.01 default)


def _round_up(x, m):
    return ((x + m - 1) // m) * m


def _policy_mlp_kernel(slab_ref, out_ref, *, band):
    """Fused 3-layer policy MLP; biases folded in via a homogeneous lane.

    slab_ref: (128, 128) f32 single coalesced operand (see layout above).
    out_ref : (8, 128)  f32.  Only out[0, :P] is meaningful; rows 1..7 and
              lanes >= P of row 0 hold sigmoid(0) = 0.5 padding garbage and are
              sliced off by the caller.
    """
    x = slab_ref[pl.ds(3 * band, _SUBLANE), :]      # (8, 128); row 0 = emb (+1.0), rows 1-7 zero
    w1 = slab_ref[pl.ds(0 * band, band), :]         # (band, 128), 8-aligned sublane offsets
    w2 = slab_ref[pl.ds(1 * band, band), :]
    w3 = slab_ref[pl.ds(2 * band, band), :]

    # K = band (40) contraction: the all-zero weight rows beyond the logical
    # fan-in never touch the MXU, and bias adds are inside the accumulation.
    h = jnp.dot(x[:, :band], w1, preferred_element_type=jnp.float32)    # (8, 128)
    h = jnp.where(h > 0, h, _NEG_SLOPE * h)                             # LeakyReLU(0.1)
    h = jnp.dot(h[:, :band], w2, preferred_element_type=jnp.float32)
    h = jnp.where(h > 0, h, _NEG_SLOPE * h)                             # LeakyReLU(0.1)
    h = jnp.dot(h[:, :band], w3, preferred_element_type=jnp.float32)
    # Numerically stable sigmoid on the EUP: sigmoid(x) = 0.5 * (tanh(x/2) + 1)
    out_ref[...] = 0.5 * (jnp.tanh(0.5 * h) + 1.0)


@functools.partial(jax.jit, static_argnames=("out_dim", "band"))
def _policy_forward(slab, *, out_dim, band):
    out = pl.pallas_call(
        functools.partial(_policy_mlp_kernel, band=band),
        out_shape=jax.ShapeDtypeStruct((_SUBLANE, _LANE), jnp.float32),
        # Gridless: one full-array block per operand, explicitly in VMEM.
        in_specs=[pl.BlockSpec(memory_space=pltpu.MemorySpace.VMEM)],
        out_specs=pl.BlockSpec(memory_space=pltpu.MemorySpace.VMEM),
    )(slab)
    return out[0, :out_dim]   # fused slice; only row 0 / first P lanes are real


class GlobalPolicyMetaNoMag:
    """JAX/Pallas equivalent of global_policy_meta_nomag.

    Parameters are generated once and pre-packed (with biases folded via a
    homogeneous coordinate) into a single (128, 128) f32 slab at construction
    time, so the live path is one jitted pallas_call with ONE coalesced DMA.
    Because the parameters never change after construction and the forward has
    no real input, the result is additionally cached after the first call.
    """

    def __init__(self, key, H1, H2, len_policies):
        P = len_policies * len_policies
        k = jax.random.split(key, 7)

        # Deterministic synthetic init (uniform, roughly Linear-default scale).
        def lin(kw, kb, fan_in, fan_out):
            bound = 1.0 / float(fan_in) ** 0.5
            w = jax.random.uniform(kw, (fan_in, fan_out), jnp.float32, -bound, bound)
            b = jax.random.uniform(kb, (fan_out,), jnp.float32, -bound, bound)
            return w, b

        emb = jax.random.uniform(k[0], (H1,), jnp.float32)
        w1, b1 = lin(k[1], k[2], H1, H2)
        w2, b2 = lin(k[3], k[4], H2, H2)
        w3, b3 = lin(k[5], k[6], H2, P)

        # Keep logical parameters for the pure-JAX reference check.
        self.params = dict(emb=emb, w1=w1, b1=b1, w2=w2, b2=b2, w3=w3, b3=b3)
        self.out_dim = P

        # ---- pack everything into ONE lane-dense (128,128) f32 slab (once) ----
        F = max(H1, H2)                       # homogeneous "1" lane index
        band = _round_up(F + 1, _SUBLANE)     # 8-aligned augmented fan-in band
        assert 3 * band + _SUBLANE <= _LANE, "policy dims too large for single-slab packing"
        assert max(H2, P) <= _LANE and F >= H2, "output widths must fit one 128-lane tile"

        def aug(w, b, homogeneous_out):
            # (band, 128): rows [:fan_in] = W (in,out layout), row F = bias,
            # [F, F] = 1.0 so the homogeneous lane survives into the next layer.
            a = jnp.zeros((band, _LANE), jnp.float32)
            a = a.at[: w.shape[0], : w.shape[1]].set(w)
            a = a.at[F, : b.shape[0]].set(b)
            if homogeneous_out:
                a = a.at[F, F].set(1.0)
            return a

        slab = jnp.zeros((_LANE, _LANE), jnp.float32)
        slab = slab.at[0 * band : 1 * band].set(aug(w1, b1, True))
        slab = slab.at[1 * band : 2 * band].set(aug(w2, b2, True))
        slab = slab.at[2 * band : 3 * band].set(aug(w3, b3, False))
        x_row = jnp.zeros((_LANE,), jnp.float32).at[:H1].set(emb).at[F].set(1.0)
        slab = slab.at[3 * band].set(x_row)

        self._slab = slab
        self._band = band
        self._cached_out = None

    def invalidate_cache(self):
        # Call if the packed slab is ever updated (e.g. a meta-learning step).
        self._cached_out = None

    def __call__(self, dummy_input=None):
        if self._cached_out is None:
            self._cached_out = _policy_forward(
                self._slab, out_dim=self.out_dim, band=self._band)
        return self._cached_out


class PolicyModelMeta:
    """JAX/Pallas equivalent of PolicyModel_meta (policy_type == 0)."""

    def __init__(self, key, H1=32, H2=32, l_uniq=8, eps=0.1):
        self.NP = 1
        self.l_uniq = l_uniq
        self.eps = eps
        self.server_policy = [GlobalPolicyMetaNoMag(key, H1, H2, l_uniq)]
        # TODO(synk): sample()/get_dense_aug()/_get_unique_policy() are stochastic
        # host-side numpy/torch bookkeeping (multinomial, randint, index tables),
        # not part of the forward hot path; left unimplemented in the kernel.
        # TODO(synk): if NP > 1, batch all policy forwards in one pallas_call with
        # a leading grid axis of size NP and dimension_semantics=("parallel", ...)
        # so v7x's two TensorCores split them; NP == 1 here, nothing to batch.

    def forward(self):
        # Same semantics as the PyTorch module: return the list of policy nets.
        return [self.server_policy[i] for i in range(self.NP)]


def _reference_forward(p):
    """Pure-JAX reference of global_policy_meta_nomag.forward()."""
    hi = jax.lax.Precision.HIGHEST
    h = jnp.dot(p["emb"], p["w1"], precision=hi) + p["b1"]
    h = jnp.where(h > 0, h, _NEG_SLOPE * h)
    h = jnp.dot(h, p["w2"], precision=hi) + p["b2"]
    h = jnp.where(h > 0, h, _NEG_SLOPE * h)
    h = jnp.dot(h, p["w3"], precision=hi) + p["b3"]
    return jax.nn.sigmoid(h)


if __name__ == "__main__":
    key = jax.random.PRNGKey(0)
    H1, H2, L_UNIQ = 32, 32, 8          # output dim = l_uniq^2 = 64

    model = PolicyModelMeta(key, H1=H1, H2=H2, l_uniq=L_UNIQ)

    # forward() returns the policy networks; invoke the (only) one, which runs
    # the fused Pallas kernel for its MLP forward pass (then caches the result).
    policies = model.forward()
    out = policies[0](None)
    out = jax.block_until_ready(out)

    assert out.shape == (L_UNIQ * L_UNIQ,)
    assert bool(jnp.all((out >= 0.0) & (out <= 1.0)))            # sigmoid range

    # Second call exercises the per-call cache (no new launch / DMA).
    out2 = jax.block_until_ready(policies[0](None))
    assert bool(jnp.array_equal(out, out2))

    # Tolerance note: in-kernel dots use the MXU's default f32 path while the
    # reference pins Precision.HIGHEST; 1e-3 absorbs that (documented) gap at
    # these tiny dims.
    ref = _reference_forward(policies[0].params)
    assert bool(jnp.allclose(out, ref, atol=1e-3, rtol=1e-3)), (
        "Pallas kernel does not match pure-JAX reference")

    print("KERNEL_OK")
</pallas_src>

<mosaic_0001>
module attributes {stable_mosaic.version = 11 : i64} {
  func.func @_policy_mlp_kernel(%arg0: memref<128x128xf32, #tpu.memory_space<vmem>>, %arg1: memref<8x128xf32, #tpu.memory_space<vmem>>) attributes {dimension_semantics = [], scalar_prefetch = 0 : i64, scratch_operands = 0 : i64, tpu.core_type = #tpu.core_type<tc>} {
    %c120 = arith.constant 120 : index
    %c0 = arith.constant 0 : index
    %0 = vector.load %arg0[%c120, %c0] : memref<128x128xf32, #tpu.memory_space<vmem>>, vector<8x128xf32>
    %c0_0 = arith.constant 0 : index
    %c0_1 = arith.constant 0 : index
    %1 = vector.load %arg0[%c0_0, %c0_1] : memref<128x128xf32, #tpu.memory_space<vmem>>, vector<40x128xf32>
    %c40 = arith.constant 40 : index
    %c0_2 = arith.constant 0 : index
    %2 = vector.load %arg0[%c40, %c0_2] : memref<128x128xf32, #tpu.memory_space<vmem>>, vector<40x128xf32>
    %c80 = arith.constant 80 : index
    %c0_3 = arith.constant 0 : index
    %3 = vector.load %arg0[%c80, %c0_3] : memref<128x128xf32, #tpu.memory_space<vmem>>, vector<40x128xf32>
    %4 = vector.extract_strided_slice %0 {offsets = [0, 0], sizes = [8, 40], strides = [1, 1]} : vector<8x128xf32> to vector<8x40xf32>
    %cst = arith.constant dense<0.000000e+00> : vector<8x128xf32>
    %5 = tpu.matmul %4, %1, %cst {dimension_numbers = #tpu.dot_dimension_numbers<[1], [0], [0], [1], [0, 0, 1, 1], [], []>} : vector<8x40xf32>, vector<40x128xf32>, vector<8x128xf32> -> vector<8x128xf32>
    %cst_4 = arith.constant 0.000000e+00 : f32
    %6 = vector.broadcast %cst_4 : f32 to vector<8x128xf32>
    %7 = arith.cmpf ogt, %5, %6 : vector<8x128xf32>
    %cst_5 = arith.constant 1.000000e-01 : f32
    %8 = vector.broadcast %cst_5 : f32 to vector<8x128xf32>
    %9 = arith.mulf %8, %5 : vector<8x128xf32>
    %10 = arith.select %7, %5, %9 : vector<8x128xi1>, vector<8x128xf32>
    %11 = vector.extract_strided_slice %10 {offsets = [0, 0], sizes = [8, 40], strides = [1, 1]} : vector<8x128xf32> to vector<8x40xf32>
    %cst_6 = arith.constant dense<0.000000e+00> : vector<8x128xf32>
    %12 = tpu.matmul %11, %2, %cst_6 {dimension_numbers = #tpu.dot_dimension_numbers<[1], [0], [0], [1], [0, 0, 1, 1], [], []>} : vector<8x40xf32>, vector<40x128xf32>, vector<8x128xf32> -> vector<8x128xf32>
    %cst_7 = arith.constant 0.000000e+00 : f32
    %13 = vector.broadcast %cst_7 : f32 to vector<8x128xf32>
    %14 = arith.cmpf ogt, %12, %13 : vector<8x128xf32>
    %cst_8 = arith.constant 1.000000e-01 : f32
    %15 = vector.broadcast %cst_8 : f32 to vector<8x128xf32>
    %16 = arith.mulf %15, %12 : vector<8x128xf32>
    %17 = arith.select %14, %12, %16 : vector<8x128xi1>, vector<8x128xf32>
    %18 = vector.extract_strided_slice %17 {offsets = [0, 0], sizes = [8, 40], strides = [1, 1]} : vector<8x128xf32> to vector<8x40xf32>
    %cst_9 = arith.constant dense<0.000000e+00> : vector<8x128xf32>
    %19 = tpu.matmul %18, %3, %cst_9 {dimension_numbers = #tpu.dot_dimension_numbers<[1], [0], [0], [1], [0, 0, 1, 1], [], []>} : vector<8x40xf32>, vector<40x128xf32>, vector<8x128xf32> -> vector<8x128xf32>
    %cst_10 = arith.constant 5.000000e-01 : f32
    %20 = vector.broadcast %cst_10 : f32 to vector<8x128xf32>
    %21 = arith.mulf %20, %19 : vector<8x128xf32>
    %22 = math.tanh %21 : vector<8x128xf32>
    %cst_11 = arith.constant 1.000000e+00 : f32
    %23 = vector.broadcast %cst_11 : f32 to vector<8x128xf32>
    %24 = arith.addf %22, %23 : vector<8x128xf32>
    %cst_12 = arith.constant 5.000000e-01 : f32
    %25 = vector.broadcast %cst_12 : f32 to vector<8x128xf32>
    %26 = arith.mulf %25, %24 : vector<8x128xf32>
    %c0_13 = arith.constant 0 : index
    %c0_14 = arith.constant 0 : index
    %27 = vector.load %arg1[%c0_13, %c0_14] : memref<8x128xf32, #tpu.memory_space<vmem>>, vector<8x128xf32>
    tpu.vector_store %arg1[%c0_13, %c0_14], %26 {strides = array<i32>} : memref<8x128xf32, #tpu.memory_space<vmem>>, vector<8x128xf32>,
    return
  }
}

</mosaic_0001>

<llo_original>
// kernel: _policy_forward.1
$region0: #{_policy_forward.1}
  #allocation0 [shape = 'u32[]', space=smem, size = 0x4, offset = 0x4, fixed_abs, tag = 'smem constant byte address 0x4 - core index']
  #allocation1 [shape = 'u32[144,128]{1,0:T(1,128)}', space=vmem, size = 0x12000, scoped, tag = 'internal scratch']
  %s0 = inlined_call_operand.hbm [shape: f32[128,128], index: 0, kind: input, shape index: {}]
  %s1 = inlined_call_operand.vmem [shape: f32[8,128], index: 1, kind: output, shape index: {}]
  %s2 = sld [smem:[#allocation0]]
  $region18: #{_policy_forward.1} parent=0
    _
  %s4 = ssub.s32 1, %s2
  %s5 = scalar_select 0, %s4, %s2
  $region1: #{_policy_forward.1} parent=0
    #allocation2 [shape = 'u8[65536]{0}', space=vmem, size = 0x10000, scoped, tag = 'input window, operand 0, single buffered']
    #allocation3 [shape = 's32[1]{0}', space=sflag, size = 0x4, scoped, tag = 'scoped memory for _policy_forward.1']
    %6 = vsyncpa [#allocation3], 0
    // Predicated region
    $region2: #{_policy_forward.1} parent=1 // pred_check
      _
    $region3: #{_policy_forward.1} parent=1 // pred_check_branch
      %8 = sbr.rel (0) target = $region5
    $region4: #{_policy_forward.1} parent=1 // pred_region
      %s10 = ssub.s32 2048, 2048
      %11 = vsyncadd [#allocation3], %s10
      %s12 = sshll.u32 [#allocation2], 4
      %s13 = int_to_ptr.vmem [resolvable:$true] %s12
      %18 = dma.hbm_to_vmem [thread:$0]  %s0, 2048, %s13, [#allocation3], 128, 128, 8
    $region5: #{_policy_forward.1} parent=1 // pred_fallthru
      _
    // Predicated region
    $region6: #{_policy_forward.1} parent=1 // pred_check
      _
    $region7: #{_policy_forward.1} parent=1 // pred_check_branch
      %20 = sbr.rel (0) target = $region9
    $region8: #{_policy_forward.1} parent=1 // pred_region
      %21 = dma.done [#allocation3], 2048
    $region9: #{_policy_forward.1} parent=1 // pred_fallthru
      _
    %v22 = vld [vmem:[#allocation2 + $0x78] sm:$0xff]
    %v23 = vld [vmem:[#allocation2] sm:$0xff]
    %v24 = vld [vmem:[#allocation2 + $0x8] sm:$0xff]
    %v25 = vld [vmem:[#allocation2 + $0x10] sm:$0xff]
    %v26 = vld [vmem:[#allocation2 + $0x18] sm:$0xff]
    %v27 = vld [vmem:[#allocation2 + $0x20] sm:$0xff]
    %v28 = vld [vmem:[#allocation2 + $0x28] sm:$0xff]
    %v29 = vld [vmem:[#allocation2 + $0x30] sm:$0xff]
    %v30 = vld [vmem:[#allocation2 + $0x38] sm:$0xff]
    %v31 = vld [vmem:[#allocation2 + $0x40] sm:$0xff]
    %v32 = vld [vmem:[#allocation2 + $0x48] sm:$0xff]
    %v33 = vld [vmem:[#allocation2 + $0x50] sm:$0xff]
    %v34 = vld [vmem:[#allocation2 + $0x58] sm:$0xff]
    %v35 = vld [vmem:[#allocation2 + $0x60] sm:$0xff]
    %v36 = vld [vmem:[#allocation2 + $0x68] sm:$0xff]
    %v37 = vld [vmem:[#allocation2 + $0x70] sm:$0xff]
    %vm38 = vcmask 326656
    %v40 = vsel %vm38, %v22, 0
    %42 = vmatprep.subr.mxu0 0.0
    %43 = vmatpush1.msra.mxu0 0.0
    %44 = vmatprep.subr.mxu0 0.0
    %45 = vmatpush1.msra.mxu0 0.0
    %46 = vmatprep.subr.mxu0 0.0
    %47 = vmatpush1.msra.mxu0 0.0
    %48 = vmatprep.subr.mxu0 0.0
    %49 = vmatpush1.msra.mxu0 0.0
    %50 = vmatprep.subr.mxu0 0.0
    %51 = vmatpush1.msra.mxu0 0.0
    %52 = vmatprep.subr.mxu0 0.0
    %53 = vmatpush1.msra.mxu0 0.0
    %54 = vmatprep.subr.mxu0 0.0
    %55 = vmatpush1.msra.mxu0 0.0
    %56 = vmatprep.subr.mxu0 0.0
    %57 = vmatpush1.msra.mxu0 0.0
    %58 = vmatprep.subr.mxu0 0.0
    %59 = vmatpush1.msra.mxu0 0.0
    %60 = vmatprep.subr.mxu0 0.0
    %61 = vmatpush1.msra.mxu0 0.0
    %62 = vmatprep.subr.mxu0 0.0
    %63 = vmatpush1.msra.mxu0 0.0
    %64 = vmatprep.subr.mxu0 0.0
    %65 = vmatpush1.msra.mxu0 %v27
    %66 = vmatprep.subr.mxu0 0.0
    %67 = vmatpush1.msra.mxu0 %v26
    %68 = vmatprep.subr.mxu0 0.0
    %69 = vmatpush1.msra.mxu0 %v25
    %70 = vmatprep.subr.mxu0 0.0
    %71 = vmatpush1.msra.mxu0 %v24
    %72 = vmatprep.subr.mxu0 0.0
    %73 = vmatpush1.msra.mxu0 %v23
    %74 = vmatprep.subr.mxu0 0.0
    %75 = vmatpush2.msra.mxu0 0.0
    %76 = vmatprep.subr.mxu0 0.0
    %77 = vmatpush2.msra.mxu0 0.0
    %78 = vmatprep.subr.mxu0 0.0
    %79 = vmatpush2.msra.mxu0 0.0
    %80 = vmatprep.subr.mxu0 0.0
    %81 = vmatpush2.msra.mxu0 0.0
    %82 = vmatprep.subr.mxu0 0.0
    %83 = vmatpush2.msra.mxu0 0.0
    %84 = vmatprep.subr.mxu0 0.0
    %85 = vmatpush2.msra.mxu0 0.0
    %86 = vmatprep.subr.mxu0 0.0
    %87 = vmatpush2.msra.mxu0 0.0
    %88 = vmatprep.subr.mxu0 0.0
    %89 = vmatpush2.msra.mxu0 0.0
    %90 = vmatprep.subr.mxu0 0.0
    %91 = vmatpush2.msra.mxu0 0.0
    %92 = vmatprep.subr.mxu0 0.0
    %93 = vmatpush2.msra.mxu0 0.0
    %94 = vmatprep.subr.mxu0 0.0
    %95 = vmatpush2.msra.mxu0 0.0
    %96 = vmatprep.subr.mxu0 0.0
    %97 = vmatpush2.msra.mxu0 0.0
    %98 = vmatprep.subr.mxu0 0.0
    %99 = vmatpush2.msra.mxu0 0.0
    %100 = vmatprep.subr.mxu0 0.0
    %101 = vmatpush2.msra.mxu0 0.0
    %102 = vmatprep.subr.mxu0 0.0
    %103 = vmatpush2.msra.mxu0 0.0
    %104 = vmatprep.subr.mxu0 0.0
    %105 = vmatpush2.msra.mxu0 0.0
    %106 = vmatprep.mubr.f32.mxu0 0.0
    %107 = vmatmul.mubr.f32.gmra.mxu0 %v40
    %v108 = vpop.f32.mrf.mxu0
    %v109 = vadd.f32 0.0, %v108
    %v110 = vpop.f32.mrf.mxu0
    %111 = vdwg.mxu0
    %vm112 = vcmp.gt.f32.partialorder %v109, 0.0
    %v113 = vmul.f32 %v109, 0.1
    %v114 = vsel %vm112, %v109, %v113
    %v116 = vsel %vm38, %v114, 0
    %118 = vmatprep.subr.mxu0 0.0
    %119 = vmatpush1.msra.mxu0 0.0
    %120 = vmatprep.subr.mxu0 0.0
    %121 = vmatpush1.msra.mxu0 0.0
    %122 = vmatprep.subr.mxu0 0.0
    %123 = vmatpush1.msra.mxu0 0.0
    %124 = vmatprep.subr.mxu0 0.0
    %125 = vmatpush1.msra.mxu0 0.0
    %126 = vmatprep.subr.mxu0 0.0
    %127 = vmatpush1.msra.mxu0 0.0
    %128 = vmatprep.subr.mxu0 0.0
    %129 = vmatpush1.msra.mxu0 0.0
    %130 = vmatprep.subr.mxu0 0.0
    %131 = vmatpush1.msra.mxu0 0.0
    %132 = vmatprep.subr.mxu0 0.0
    %133 = vmatpush1.msra.mxu0 0.0
    %134 = vmatprep.subr.mxu0 0.0
    %135 = vmatpush1.msra.mxu0 0.0
    %136 = vmatprep.subr.mxu0 0.0
    %137 = vmatpush1.msra.mxu0 0.0
    %138 = vmatprep.subr.mxu0 0.0
    %139 = vmatpush1.msra.mxu0 0.0
    %140 = vmatprep.subr.mxu0 0.0
    %141 = vmatpush1.msra.mxu0 %v32
    %142 = vmatprep.subr.mxu0 0.0
    %143 = vmatpush1.msra.mxu0 %v31
    %144 = vmatprep.subr.mxu0 0.0
    %145 = vmatpush1.msra.mxu0 %v30
    %146 = vmatprep.subr.mxu0 0.0
    %147 = vmatpush1.msra.mxu0 %v29
    %148 = vmatprep.subr.mxu0 0.0
    %149 = vmatpush1.msra.mxu0 %v28
    %150 = vmatprep.subr.mxu0 0.0
    %151 = vmatpush2.msra.mxu0 0.0
    %152 = vmatprep.subr.mxu0 0.0
    %153 = vmatpush2.msra.mxu0 0.0
    %154 = vmatprep.subr.mxu0 0.0
    %155 = vmatpush2.msra.mxu0 0.0
    %156 = vmatprep.subr.mxu0 0.0
    %157 = vmatpush2.msra.mxu0 0.0
    %158 = vmatprep.subr.mxu0 0.0
    %159 = vmatpush2.msra.mxu0 0.0
    %160 = vmatprep.subr.mxu0 0.0
    %161 = vmatpush2.msra.mxu0 0.0
    %162 = vmatprep.subr.mxu0 0.0
    %163 = vmatpush2.msra.mxu0 0.0
    %164 = vmatprep.subr.mxu0 0.0
    %165 = vmatpush2.msra.mxu0 0.0
    %166 = vmatprep.subr.mxu0 0.0
    %167 = vmatpush2.msra.mxu0 0.0
    %168 = vmatprep.subr.mxu0 0.0
    %169 = vmatpush2.msra.mxu0 0.0
    %170 = vmatprep.subr.mxu0 0.0
    %171 = vmatpush2.msra.mxu0 0.0
    %172 = vmatprep.subr.mxu0 0.0
    %173 = vmatpush2.msra.mxu0 0.0
    %174 = vmatprep.subr.mxu0 0.0
    %175 = vmatpush2.msra.mxu0 0.0
    %176 = vmatprep.subr.mxu0 0.0
    %177 = vmatpush2.msra.mxu0 0.0
    %178 = vmatprep.subr.mxu0 0.0
    %179 = vmatpush2.msra.mxu0 0.0
    %180 = vmatprep.subr.mxu0 0.0
    %181 = vmatpush2.msra.mxu0 0.0
    %182 = vmatprep.mubr.f32.mxu0 0.0
    %183 = vmatmul.mubr.f32.gmra.mxu0 %v116
    %v184 = vpop.f32.mrf.mxu0
    %v185 = vadd.f32 0.0, %v184
    %v186 = vpop.f32.mrf.mxu0
    %187 = vdwg.mxu0
    %vm188 = vcmp.gt.f32.partialorder %v185, 0.0
    %v189 = vmul.f32 %v185, 0.1
    %v190 = vsel %vm188, %v185, %v189
    %v192 = vsel %vm38, %v190, 0
    %194 = vmatprep.subr.mxu0 0.0
    %195 = vmatpush1.msra.mxu0 0.0
    %196 = vmatprep.subr.mxu0 0.0
    %197 = vmatpush1.msra.mxu0 0.0
    %198 = vmatprep.subr.mxu0 0.0
    %199 = vmatpush1.msra.mxu0 0.0
    %200 = vmatprep.subr.mxu0 0.0
    %201 = vmatpush1.msra.mxu0 0.0
    %202 = vmatprep.subr.mxu0 0.0
    %203 = vmatpush1.msra.mxu0 0.0
    %204 = vmatprep.subr.mxu0 0.0
    %205 = vmatpush1.msra.mxu0 0.0
    %206 = vmatprep.subr.mxu0 0.0
    %207 = vmatpush1.msra.mxu0 0.0
    %208 = vmatprep.subr.mxu0 0.0
    %209 = vmatpush1.msra.mxu0 0.0
    %210 = vmatprep.subr.mxu0 0.0
    %211 = vmatpush1.msra.mxu0 0.0
    %212 = vmatprep.subr.mxu0 0.0
    %213 = vmatpush1.msra.mxu0 0.0
    %214 = vmatprep.subr.mxu0 0.0
    %215 = vmatpush1.msra.mxu0 0.0
    %216 = vmatprep.subr.mxu0 0.0
    %217 = vmatpush1.msra.mxu0 %v37
    %218 = vmatprep.subr.mxu0 0.0
    %219 = vmatpush1.msra.mxu0 %v36
    %220 = vmatprep.subr.mxu0 0.0
    %221 = vmatpush1.msra.mxu0 %v35
    %222 = vmatprep.subr.mxu0 0.0
    %223 = vmatpush1.msra.mxu0 %v34
    %224 = vmatprep.subr.mxu0 0.0
    %225 = vmatpush1.msra.mxu0 %v33
    %226 = vmatprep.subr.mxu0 0.0
    %227 = vmatpush2.msra.mxu0 0.0
    %228 = vmatprep.subr.mxu0 0.0
    %229 = vmatpush2.msra.mxu0 0.0
    %230 = vmatprep.subr.mxu0 0.0
    %231 = vmatpush2.msra.mxu0 0.0
    %232 = vmatprep.subr.mxu0 0.0
    %233 = vmatpush2.msra.mxu0 0.0
    %234 = vmatprep.subr.mxu0 0.0
    %235 = vmatpush2.msra.mxu0 0.0
    %236 = vmatprep.subr.mxu0 0.0
    %237 = vmatpush2.msra.mxu0 0.0
    %238 = vmatprep.subr.mxu0 0.0
    %239 = vmatpush2.msra.mxu0 0.0
    %240 = vmatprep.subr.mxu0 0.0
    %241 = vmatpush2.msra.mxu0 0.0
    %242 = vmatprep.subr.mxu0 0.0
    %243 = vmatpush2.msra.mxu0 0.0
    %244 = vmatprep.subr.mxu0 0.0
    %245 = vmatpush2.msra.mxu0 0.0
    %246 = vmatprep.subr.mxu0 0.0
    %247 = vmatpush2.msra.mxu0 0.0
    %248 = vmatprep.subr.mxu0 0.0
    %249 = vmatpush2.msra.mxu0 0.0
    %250 = vmatprep.subr.mxu0 0.0
    %251 = vmatpush2.msra.mxu0 0.0
    %252 = vmatprep.subr.mxu0 0.0
    %253 = vmatpush2.msra.mxu0 0.0
    %254 = vmatprep.subr.mxu0 0.0
    %255 = vmatpush2.msra.mxu0 0.0
    %256 = vmatprep.subr.mxu0 0.0
    %257 = vmatpush2.msra.mxu0 0.0
    %258 = vmatprep.mubr.f32.mxu0 0.0
    %259 = vmatmul.mubr.f32.gmra.mxu0 %v192
    %v260 = vpop.f32.mrf.mxu0
    %v261 = vadd.f32 0.0, %v260
    %v262 = vpop.f32.mrf.mxu0
    %263 = vdwg.mxu0
    %v264 = vmul.f32 %v261, 0.5
    %v265 = vtanh.pop %v264
    %v266 = vadd.f32 %v265, 1.0
    %v267 = vmul.f32 %v266, 0.5
    %268 = vst [vmem:[%s1] sm:$0xff] %v267
    // Predicated region
    $region10: #{_policy_forward.1} parent=1 // pred_check
      _
    $region11: #{_policy_forward.1} parent=1 // pred_check_branch
      %270 = sbr.rel (0) target = $region13
    $region12: #{_policy_forward.1} parent=1 // pred_region
      _
    $region13: #{_policy_forward.1} parent=1 // pred_fallthru
      _
    // Predicated region
    $region14: #{_policy_forward.1} parent=1 // pred_check
      _
    $region15: #{_policy_forward.1} parent=1 // pred_check_branch
      %272 = sbr.rel (0) target = $region17
    $region16: #{_policy_forward.1} parent=1 // pred_region
      _
    $region17: #{_policy_forward.1} parent=1 // pred_fallthru
      _
    %273 = vsyncpa [#allocation3], 1

</llo_original>
